<compile_context>
chip_gen: v7x
topology: tpu7x:2x2x1
jax: 0.10.0
libtpu: 0.0.40
codegen_flags: <defaults>
</compile_context>

<pallas_src>
import jax
import jax.numpy as jnp
from jax.experimental import pallas as pl
from jax.experimental.pallas import tpu as pltpu


def _logit_kernel(x_ref, y_ref, ld_ref):
    # x block: (tb, D). One EUP exp + one divide + one EUP log, VPU elementwise,
    # XLU row-reduce. Whole hot path lives in the kernel.
    x = x_ref[...].astype(jnp.float32)
    ax = jnp.abs(x)
    e = jnp.exp(-ax)                       # in (0, 1]; never overflows
    one_pe = 1.0 + e
    inv = 1.0 / one_pe                     # exact divide (keep y tolerance)
    s = jnp.where(x >= 0, inv, e * inv)    # == sigmoid(x), shares exp with logdet
    y_ref[...] = s.astype(y_ref.dtype)

    # log(s * (1 - s)) == -(|x| + 2 * log1p(exp(-|x|)))  (stable; avoids -inf
    # when the sigmoid saturates; identical to the naive form elsewhere).
    terms = -(ax + 2.0 * jnp.log(one_pe))
    ld = jnp.sum(terms, axis=-1)           # (tb,) per-row log-det
    ld_ref[...] = ld[None, :]              # lane-dense (1, tb) store


def _round_up(n, m):
    return ((n + m - 1) // m) * m


def logit_forward(x, cond_inputs=None, mode="direct", *, tile_b=None):
    """Pallas implementation of Logit.forward.

    Due to the positional-argument quirk in the reference module, both
    mode='direct' and mode='inverse' execute the same (sigmoid) branch, so
    `mode`/`cond_inputs` are accepted but do not change the computation.

    Returns (sigmoid(x) in x.dtype, logdet of shape (B, 1) in float32).
    `tile_b`, if given, only shrinks the auto-chosen batch tile.
    """
    del cond_inputs, mode
    B, D = x.shape
    itemsize = x.dtype.itemsize

    # --- tile sizing: derive the batch tile from the VMEM budget -------------
    VMEM_LIMIT = 32 * 1024 * 1024      # scoped limit we request (safe on v5e/v6e/v7x)
    VMEM_BUDGET = 24 * 1024 * 1024     # what we let the working set occupy
    X_BLOCK_CAP = 4 * 1024 * 1024      # cap on a single x block

    ALIGN = 128                        # multiple of the packed sublane count for
                                       # f32 (8) / bf16 (16) / int8 (32), and of the
                                       # 128-lane requirement for the logdet blocks.

    row_x = D * itemsize               # one input/output row
    row_f = D * 4                      # one f32 intermediate row
    # 2x double-buffered x + 2x double-buffered y + ~6 f32 temps per row.
    per_row = 4 * row_x + 6 * row_f

    tb_cap = min(VMEM_BUDGET // per_row, X_BLOCK_CAP // max(row_x, 1))
    tb_cap = max(ALIGN, (tb_cap // ALIGN) * ALIGN)
    if tile_b is not None:
        tb_cap = max(ALIGN, min(tb_cap, _round_up(int(tile_b), ALIGN)))

    if B <= tb_cap:
        if B >= 2 * ALIGN:
            # Large-enough batch: force >= 2 tiles so v7x megacore can shard the
            # "parallel" axis across both TensorCores.
            tb = _round_up(pl.cdiv(B, 2), ALIGN)
        else:
            # Single tile: block dims equal the full array dims (any B allowed).
            tb = B
    else:
        tb = tb_cap
    num_tiles = pl.cdiv(B, tb)

    # --- pallas_call ----------------------------------------------------------
    y, ld_row = pl.pallas_call(
        _logit_kernel,
        out_shape=(
            jax.ShapeDtypeStruct((B, D), x.dtype),
            jax.ShapeDtypeStruct((1, B), jnp.float32),
        ),
        grid_spec=pltpu.PrefetchScalarGridSpec(
            num_scalar_prefetch=0,
            grid=(num_tiles,),
            in_specs=[pl.BlockSpec((tb, D), lambda i: (i, 0))],
            out_specs=[
                pl.BlockSpec((tb, D), lambda i: (i, 0)),
                pl.BlockSpec((1, tb), lambda i: (0, i)),   # lane-dense logdet row
            ],
        ),
        compiler_params=pltpu.CompilerParams(
            dimension_semantics=("parallel",),
            vmem_limit_bytes=VMEM_LIMIT,
        ),
    )(x)

    logdet = ld_row.reshape(B, 1)   # float32, (B, 1)
    return y, logdet


def _reference(x):
    # Literal (naive) reference, matching the PyTorch module's direct branch.
    xf = x.astype(jnp.float32)
    s = jax.nn.sigmoid(xf)
    ld = jnp.sum(jnp.log(s * (1.0 - s)), axis=-1, keepdims=True)
    return s.astype(x.dtype), ld


if __name__ == "__main__":
    key = jax.random.PRNGKey(0)

    # Case 1: small flow-sized input (batch, features).
    B, D = 16, 128
    x = jax.random.normal(key, (B, D), dtype=jnp.float32)
    y, logdet = logit_forward(x, mode="direct")
    jax.block_until_ready((y, logdet))
    y_ref, ld_ref = _reference(x)
    assert y.shape == (B, D) and logdet.shape == (B, 1)
    assert jnp.allclose(y, y_ref, atol=1e-5, rtol=1e-5)
    assert jnp.allclose(logdet, ld_ref, atol=1e-4, rtol=1e-5)

    # Case 2: batch not divisible by any tile, mode='inverse' (same branch).
    B2, D2 = 13, 64
    x2 = jax.random.normal(jax.random.PRNGKey(0), (B2, D2), dtype=jnp.float32)
    y2, ld2 = logit_forward(x2, mode="inverse")
    jax.block_until_ready((y2, ld2))
    y2_ref, ld2_ref = _reference(x2)
    assert y2.shape == (B2, D2) and ld2.shape == (B2, 1)
    assert jnp.allclose(y2, y2_ref, atol=1e-5, rtol=1e-5)
    assert jnp.allclose(ld2, ld2_ref, atol=1e-4, rtol=1e-5)

    # Case 3: multi-tile + ragged last block (no wrapper padding), exercises the
    # >=2-tile megacore path and OOB-masked tail writes.
    B3, D3 = 300, 128
    x3 = jax.random.normal(jax.random.PRNGKey(0), (B3, D3), dtype=jnp.float32)
    y3, ld3 = logit_forward(x3)
    jax.block_until_ready((y3, ld3))
    y3_ref, ld3_ref = _reference(x3)
    assert y3.shape == (B3, D3) and ld3.shape == (B3, 1)
    assert jnp.allclose(y3, y3_ref, atol=1e-5, rtol=1e-5)
    assert jnp.allclose(ld3, ld3_ref, atol=1e-4, rtol=1e-5)

    print("KERNEL_OK")
</pallas_src>

<mosaic_0001>
module attributes {stable_mosaic.version = 11 : i64} {
  func.func @_logit_kernel(%arg0: i32, %arg1: memref<16x128xf32, #tpu.memory_space<vmem>>, %arg2: memref<16x128xf32, #tpu.memory_space<vmem>>, %arg3: memref<1x16xf32, #tpu.memory_space<vmem>>) attributes {dimension_semantics = [#tpu.dimension_semantics<parallel>], iteration_bounds = array<i64: 1>, scalar_prefetch = 0 : i64, scratch_operands = 0 : i64, tpu.core_type = #tpu.core_type<tc>, window_params = [{transform_indices = @transform_0, window_bounds = array<i64: 16, 128>}, {transform_indices = @transform_1, window_bounds = array<i64: 16, 128>}, {transform_indices = @transform_2, window_bounds = array<i64: 1, 16>}]} {
    %c0 = arith.constant 0 : index
    %c0_0 = arith.constant 0 : index
    %0 = vector.load %arg1[%c0, %c0_0] : memref<16x128xf32, #tpu.memory_space<vmem>>, vector<16x128xf32>
    %1 = math.absf %0 : vector<16x128xf32>
    %cst = arith.constant 0.000000e+00 : f32
    %2 = vector.broadcast %cst : f32 to vector<16x128xf32>
    %3 = arith.subf %2, %1 : vector<16x128xf32>
    %4 = math.exp %3 : vector<16x128xf32>
    %cst_1 = arith.constant 1.000000e+00 : f32
    %5 = vector.broadcast %cst_1 : f32 to vector<16x128xf32>
    %6 = arith.addf %5, %4 : vector<16x128xf32>
    %cst_2 = arith.constant 1.000000e+00 : f32
    %7 = vector.broadcast %cst_2 : f32 to vector<16x128xf32>
    %8 = arith.divf %7, %6 : vector<16x128xf32>
    %cst_3 = arith.constant 0.000000e+00 : f32
    %9 = vector.broadcast %cst_3 : f32 to vector<16x128xf32>
    %10 = arith.cmpf oge, %0, %9 : vector<16x128xf32>
    %11 = arith.mulf %4, %8 : vector<16x128xf32>
    %12 = arith.select %10, %8, %11 : vector<16x128xi1>, vector<16x128xf32>
    %c0_4 = arith.constant 0 : index
    %c0_5 = arith.constant 0 : index
    %13 = vector.load %arg2[%c0_4, %c0_5] : memref<16x128xf32, #tpu.memory_space<vmem>>, vector<16x128xf32>
    tpu.vector_store %arg2[%c0_4, %c0_5], %12 {strides = array<i32>} : memref<16x128xf32, #tpu.memory_space<vmem>>, vector<16x128xf32>,
    %14 = math.log %6 : vector<16x128xf32>
    %cst_6 = arith.constant 2.000000e+00 : f32
    %15 = vector.broadcast %cst_6 : f32 to vector<16x128xf32>
    %16 = arith.mulf %15, %14 : vector<16x128xf32>
    %17 = arith.addf %1, %16 : vector<16x128xf32>
    %cst_7 = arith.constant 0.000000e+00 : f32
    %18 = vector.broadcast %cst_7 : f32 to vector<16x128xf32>
    %19 = arith.subf %18, %17 : vector<16x128xf32>
    %cst_8 = arith.constant dense<0.000000e+00> : vector<16xf32>
    %20 = vector.multi_reduction <add>, %19, %cst_8 [1] : vector<16x128xf32> to vector<16xf32>
    %21 = vector.shape_cast %20 : vector<16xf32> to vector<1x16xf32>
    %c0_9 = arith.constant 0 : index
    %c0_10 = arith.constant 0 : index
    %22 = vector.load %arg3[%c0_9, %c0_10] : memref<1x16xf32, #tpu.memory_space<vmem>>, vector<1x16xf32>
    tpu.vector_store %arg3[%c0_9, %c0_10], %21 {strides = array<i32>} : memref<1x16xf32, #tpu.memory_space<vmem>>, vector<1x16xf32>,
    return
  }
  func.func @transform_0(%arg0: i32) -> (i32, i32) {
    %c0_i32 = arith.constant 0 : i32
    %c0_i32_0 = arith.constant 0 : i32
    return %arg0, %c0_i32 : i32, i32
  }
  func.func @transform_1(%arg0: i32) -> (i32, i32) {
    %c0_i32 = arith.constant 0 : i32
    %c0_i32_0 = arith.constant 0 : i32
    return %arg0, %c0_i32 : i32, i32
  }
  func.func @transform_2(%arg0: i32) -> (i32, i32) {
    %c0_i32 = arith.constant 0 : i32
    %c0_i32_0 = arith.constant 0 : i32
    return %c0_i32, %arg0 : i32, i32
  }
}

</mosaic_0001>

<llo_original>
// kernel: tpu_custom_call.1
$region0: #{tpu_custom_call.1}
  #allocation0 [shape = 'u32[]', space=smem, size = 0x4, offset = 0x4, fixed_abs, tag = 'smem constant byte address 0x4 - core index']
  #allocation1 [shape = 'u32[144,128]{1,0:T(1,128)}', space=vmem, size = 0x12000, scoped, tag = 'internal scratch']
  %s0 = inlined_call_operand.hbm [shape: f32[16,128], index: 0, kind: input, shape index: {}]
  %s1 = inlined_call_operand.hbm [shape: f32[16,128], index: 1, kind: output, shape index: {0}]
  %s2 = inlined_call_operand.hbm [shape: f32[1,16], index: 2, kind: output, shape index: {1}]
  %3 = xla_tuple %s1, %s2
  %s4 = sld [smem:[#allocation0]]
  $region26: #{tpu_custom_call.1} parent=0
    _
  %s6 = ssub.s32 1, %s4
  %s7 = scalar_select 0, %s6, %s4
  $region1: #{tpu_custom_call.1} parent=0
    #allocation2 [shape = 'u8[8192]{0}', space=vmem, size = 0x2000, scoped, tag = 'input window, operand 0, single buffered']
    #allocation3 [shape = 's32[1]{0}', space=sflag, size = 0x4, scoped, tag = 'scoped memory for tpu_custom_call.1']
    #allocation4 [shape = 's32[1]{0}', space=sflag, size = 0x4, scoped, tag = 'scoped memory for tpu_custom_call.1']
    #allocation5 [shape = 'u8[8192]{0}', space=vmem, size = 0x2000, scoped, tag = 'output window, operand 0, single buffered']
    #allocation6 [shape = 'u8[512]{0}', space=vmem, size = 0x400, scoped, tag = 'output window, operand 1, single buffered']
    #allocation7 [shape = 's32[1]{0}', space=sflag, size = 0x4, scoped, tag = 'scoped memory for tpu_custom_call.1']
    %8 = vsyncpa [#allocation3], 0
    %9 = vsyncpa [#allocation4], 0
    %10 = vsyncpa [#allocation7], 0
    // Predicated region
    $region2: #{tpu_custom_call.1} parent=1 // pred_check
      _
    $region3: #{tpu_custom_call.1} parent=1 // pred_check_branch
      %12 = sbr.rel (0) target = $region5
    $region4: #{tpu_custom_call.1} parent=1 // pred_region
      %s14 = ssub.s32 256, 256
      %15 = vsyncadd [#allocation3], %s14
      %s16 = sshll.u32 [#allocation2], 4
      %s17 = int_to_ptr.vmem [resolvable:$true] %s16
      %22 = dma.hbm_to_vmem [thread:$0]  %s0, 256, %s17, [#allocation3], 128, 128, 8
    $region5: #{tpu_custom_call.1} parent=1 // pred_fallthru
      _
    // Predicated region
    $region6: #{tpu_custom_call.1} parent=1 // pred_check
      _
    $region7: #{tpu_custom_call.1} parent=1 // pred_check_branch
      %24 = sbr.rel (0) target = $region9
    $region8: #{tpu_custom_call.1} parent=1 // pred_region
      %25 = dma.done [#allocation3], 256
    $region9: #{tpu_custom_call.1} parent=1 // pred_fallthru
      _
    %v26 = vld [vmem:[#allocation2] sm:$0xff]
    %v27 = vld [vmem:[#allocation2 + $0x8] sm:$0xff]
    %v28 = vand.u32 2147483647, %v26
    %v29 = vand.u32 2147483647, %v27
    %v30 = vsub.f32 0.0, %v28
    %v31 = vsub.f32 0.0, %v29
    %v32 = vmul.f32 %v30, 1.442695
    %v33 = vpow.pop %v32
    %v34 = vmul.f32 %v31, 1.442695
    %v35 = vpow.pop %v34
    %v36 = vadd.f32 %v33, 1.0
    %v37 = vadd.f32 %v35, 1.0
    %v38 = vrcp.pop %v36
    %v39 = vmul.f32 1.0, %v38
    %v40 = vrcp.pop %v37
    %v41 = vmul.f32 1.0, %v40
    %vm42 = vcmp.ge.f32.partialorder %v26, 0.0
    %vm43 = vcmp.ge.f32.partialorder %v27, 0.0
    %v44 = vmul.f32 %v33, %v39
    %v45 = vmul.f32 %v35, %v41
    %v46 = vsel %vm42, %v39, %v44
    %v47 = vsel %vm43, %v41, %v45
    %48 = vst [vmem:[#allocation5] sm:$0xff] %v46
    %49 = vst [vmem:[#allocation5 + $0x8] sm:$0xff] %v47
    %v50 = vlog2.pop %v36
    %v51 = vmul.f32 %v50, 0.6931472
    %v52 = vlog2.pop %v37
    %v53 = vmul.f32 %v52, 0.6931472
    %v54 = vmul.f32 %v51, 2.0
    %v55 = vmul.f32 %v53, 2.0
    %v56 = vadd.f32 %v28, %v54
    %v57 = vadd.f32 %v29, %v55
    %v58 = vsub.f32 0.0, %v56
    %v59 = vsub.f32 0.0, %v57
    %60 = vadd.xlane.f32.xlu0 %v58
    %v61 = vpop.xlane.xlu0 %60
    %62 = vadd.xlane.f32.xlu0 %v59
    %v63 = vpop.xlane.xlu0 %62
    %v66 = vlaneseq
    %v67 = vand.u32 %v66, 127
    %v68 = vlaneseq
    %v69 = vshrl.u32 %v68, 7
    %v70 = vsub.s32 %v67, %v69
    %v71 = vrot.slane %v61, %v70
    %v72 = vadd.s32 %v67, 4294967288
    %v73 = vlaneseq
    %v74 = vshrl.u32 %v73, 7
    %v75 = vsub.s32 %v72, %v74
    %v76 = vrot.slane %v63, %v75
    %vm77 = vcmask 130112
    %v78 = vsel %vm77, %v76, %v71
    %vm80 = vcmask 122880
    %81 = vst.msk [vmem:[#allocation6] sm:$0x1] %vm80, %v78
    // Predicated region
    $region10: #{tpu_custom_call.1} parent=1 // pred_check
      _
    $region11: #{tpu_custom_call.1} parent=1 // pred_check_branch
      %83 = sbr.rel (0) target = $region13
    $region12: #{tpu_custom_call.1} parent=1 // pred_region
      %s85 = ssub.s32 256, 256
      %86 = vsyncadd [#allocation4], %s85
      %s87 = sshll.u32 [#allocation5], 4
      %s88 = int_to_ptr.vmem [resolvable:$true] %s87
      %93 = dma.vmem_to_hbm [thread:$0]  %s88, 256, %s1, [#allocation4], 128, 128, 8
    $region13: #{tpu_custom_call.1} parent=1 // pred_fallthru
      _
    // Predicated region
    $region14: #{tpu_custom_call.1} parent=1 // pred_check
      _
    $region15: #{tpu_custom_call.1} parent=1 // pred_check_branch
      %95 = sbr.rel (0) target = $region17
    $region16: #{tpu_custom_call.1} parent=1 // pred_region
      %s97 = ssub.s32 16, 16
      %98 = vsyncadd [#allocation7], %s97
      %s100 = sshll.u32 [#allocation6], 4
      %s101 = int_to_ptr.vmem [resolvable:$true] %s100
      %103 = dma.vmem_to_hbm [thread:$0]  %s101, 16, %s2, [#allocation7]
    $region17: #{tpu_custom_call.1} parent=1 // pred_fallthru
      _
    // Predicated region
    $region18: #{tpu_custom_call.1} parent=1 // pred_check
      _
    $region19: #{tpu_custom_call.1} parent=1 // pred_check_branch
      %105 = sbr.rel (0) target = $region21
    $region20: #{tpu_custom_call.1} parent=1 // pred_region
      %106 = dma.done [#allocation4], 256
    $region21: #{tpu_custom_call.1} parent=1 // pred_fallthru
      _
    // Predicated region
    $region22: #{tpu_custom_call.1} parent=1 // pred_check
      _
    $region23: #{tpu_custom_call.1} parent=1 // pred_check_branch
      %108 = sbr.rel (0) target = $region25
    $region24: #{tpu_custom_call.1} parent=1 // pred_region
      %109 = dma.done [#allocation7], 16
    $region25: #{tpu_custom_call.1} parent=1 // pred_fallthru
      _
    %110 = vsyncpa [#allocation3], 1
    %111 = vsyncpa [#allocation4], 1
    %112 = vsyncpa [#allocation7], 1

</llo_original>
